<compile_context>
chip_gen: v7x
topology: tpu7x:2x2x1
jax: 0.10.0
libtpu: 0.0.40
codegen_flags: <defaults>
</compile_context>

<pallas_src>
import math

import jax
import jax.numpy as jnp
from jax.experimental import pallas as pl
from jax.experimental.pallas import tpu as pltpu


def _round_up(x, m):
    return ((x + m - 1) // m) * m


def _bassl_det_kernel_lane_dense(x_ref, w1_ref, b1_ref, w2t_ref, b2_ref, o_ref):
    # x_ref:   (TILE_N, in_ch)
    # w1_ref:  (in_ch, hid_ch)     b1_ref: (1, hid_ch)
    # w2t_ref: (1, hid_ch)         b2_ref: (1, 1)        (out_ch == 1)
    # o_ref:   (1, 1, TILE_N)      <- lane-dense output tile
    x = x_ref[...]
    h = jnp.dot(x, w1_ref[...], preferred_element_type=jnp.float32) + b1_ref[...]
    h = jnp.maximum(h, 0.0)  # ReLU
    # TODO(synk): nn.Dropout(p) is active only in training; inference-mode
    # (identity) semantics are implemented here.
    # y^T = (h @ w2)^T computed as a contraction over hid_ch on the LAST dim
    # of both operands -> shape (1, TILE_N); the store is lane-dense instead
    # of an (N, 1) masked 1-of-128-lane store.
    y = jax.lax.dot_general(
        w2t_ref[...], h.astype(w2t_ref.dtype),
        dimension_numbers=(((1,), (1,)), ((), ())),
        preferred_element_type=jnp.float32,
    ) + b2_ref[...]
    o_ref[...] = jax.nn.sigmoid(y).astype(o_ref.dtype)[None]


def _bassl_det_kernel_general(x_ref, w1_ref, b1_ref, w2_ref, b2_ref, o_ref):
    # General out_ch fallback (output tile (TILE_N, out_ch)).
    x = x_ref[...]
    h = jnp.dot(x, w1_ref[...], preferred_element_type=jnp.float32) + b1_ref[...]
    h = jnp.maximum(h, 0.0)
    y = jnp.dot(h.astype(w2_ref.dtype), w2_ref[...],
                preferred_element_type=jnp.float32) + b2_ref[...]
    o_ref[...] = jax.nn.sigmoid(y).astype(o_ref.dtype)


def bassl_det_forward(x, w1, b1, w2, b2, *, tile_n=1024, compute_dtype=None):
    """x: (B, T, in_ch). Returns sigmoid(MLP(x)).squeeze() (all size-1 dims removed)."""
    B, T, in_ch = x.shape
    hid_ch = w1.shape[1]
    out_ch = w2.shape[1]
    N = B * T

    if compute_dtype is not None:
        x = x.astype(compute_dtype)
        w1 = w1.astype(compute_dtype)
        w2 = w2.astype(compute_dtype)

    # Tile the N dimension: TILE_N is a multiple of 128 (lane-dense output),
    # clamped so tiny inputs use a single small tile.  A 1024x32 f32 x-tile is
    # ~128 KiB, so double-buffered tiles fit comfortably in VMEM on
    # v5e / v6e / v7x alike.
    tile_n = max(128, min(int(tile_n), _round_up(N, 128)))
    tile_n = _round_up(tile_n, 128)
    n_pad = _round_up(N, tile_n)
    num_tiles = n_pad // tile_n

    x2d = x.reshape(N, in_ch)
    if n_pad != N:
        x2d = jnp.pad(x2d, ((0, n_pad - N), (0, 0)))

    b1_2d = b1.reshape(1, hid_ch).astype(jnp.float32)
    b2_2d = b2.reshape(1, out_ch).astype(jnp.float32)

    compiler_params = pltpu.CompilerParams(
        dimension_semantics=("parallel",),
    )

    if out_ch == 1:
        w2t = w2.reshape(hid_ch, 1).T.reshape(1, hid_ch)  # (1, hid_ch)
        out3d = pl.pallas_call(
            _bassl_det_kernel_lane_dense,
            out_shape=jax.ShapeDtypeStruct((num_tiles, 1, tile_n), jnp.float32),
            grid_spec=pltpu.PrefetchScalarGridSpec(
                num_scalar_prefetch=0,
                grid=(num_tiles,),
                in_specs=[
                    pl.BlockSpec((tile_n, in_ch), lambda i: (i, 0)),
                    pl.BlockSpec((in_ch, hid_ch), lambda i: (0, 0)),
                    pl.BlockSpec((1, hid_ch), lambda i: (0, 0)),
                    pl.BlockSpec((1, hid_ch), lambda i: (0, 0)),
                    pl.BlockSpec((1, 1), lambda i: (0, 0)),
                ],
                out_specs=pl.BlockSpec((1, 1, tile_n), lambda i: (i, 0, 0)),
            ),
            compiler_params=compiler_params,
        )(x2d, w1, b1_2d, w2t, b2_2d.reshape(1, 1))
        out2d = out3d.reshape(n_pad, 1)[:N]
    else:
        out_full = pl.pallas_call(
            _bassl_det_kernel_general,
            out_shape=jax.ShapeDtypeStruct((n_pad, out_ch), jnp.float32),
            grid_spec=pltpu.PrefetchScalarGridSpec(
                num_scalar_prefetch=0,
                grid=(num_tiles,),
                in_specs=[
                    pl.BlockSpec((tile_n, in_ch), lambda i: (i, 0)),
                    pl.BlockSpec((in_ch, hid_ch), lambda i: (0, 0)),
                    pl.BlockSpec((1, hid_ch), lambda i: (0, 0)),
                    pl.BlockSpec((hid_ch, out_ch), lambda i: (0, 0)),
                    pl.BlockSpec((1, out_ch), lambda i: (0, 0)),
                ],
                out_specs=pl.BlockSpec((tile_n, out_ch), lambda i: (i, 0)),
            ),
            compiler_params=compiler_params,
        )(x2d, w1, b1_2d, w2, b2_2d)
        out2d = out_full[:N]

    out = out2d.astype(jnp.float32).reshape(B, T, out_ch)
    # torch's .squeeze() removes all size-1 dims.
    return jnp.squeeze(out)


def _xavier_uniform(key, fan_in, fan_out, dtype=jnp.float32):
    # Matches torch.nn.init.xavier_uniform_ bound = sqrt(6/(fan_in+fan_out)).
    bound = math.sqrt(6.0 / (fan_in + fan_out))
    return jax.random.uniform(
        key, (fan_in, fan_out), dtype=dtype, minval=-bound, maxval=bound
    )


def _reference(x, w1, b1, w2, b2):
    return jax.nn.sigmoid(jnp.maximum(x @ w1 + b1, 0.0) @ w2 + b2).squeeze()


if __name__ == "__main__":
    in_ch, hid_ch, out_ch = 32, 32, 1

    key = jax.random.PRNGKey(0)
    kx, kw1, kw2, kx2 = jax.random.split(key, 4)

    # Deterministic parameter init (xavier uniform weights, zero biases).
    w1 = _xavier_uniform(kw1, in_ch, hid_ch)          # (in_ch, hid_ch)
    b1 = jnp.zeros((hid_ch,), dtype=jnp.float32)
    w2 = _xavier_uniform(kw2, hid_ch, out_ch)         # (hid_ch, out_ch)
    b2 = jnp.zeros((out_ch,), dtype=jnp.float32)

    # --- small shape consistent with the module: x is (B, T, in_ch) ---
    B, T = 2, 8
    x = jax.random.normal(kx, (B, T, in_ch), dtype=jnp.float32)
    out = bassl_det_forward(x, w1, b1, w2, b2)
    out = jax.block_until_ready(out)
    ref = _reference(x, w1, b1, w2, b2)
    assert out.shape == (B, T), out.shape
    assert jnp.allclose(out, ref, atol=1e-5, rtol=1e-5), float(
        jnp.max(jnp.abs(out - ref))
    )

    # --- larger shape exercising multi-tile grid + N padding/slicing ---
    B2, T2 = 3, 500                                   # N = 1500 -> 2 tiles of 1024
    x_big = jax.random.normal(kx2, (B2, T2, in_ch), dtype=jnp.float32)
    out_big = jax.block_until_ready(bassl_det_forward(x_big, w1, b1, w2, b2))
    ref_big = _reference(x_big, w1, b1, w2, b2)
    assert out_big.shape == (B2, T2), out_big.shape
    assert jnp.allclose(out_big, ref_big, atol=1e-5, rtol=1e-5), float(
        jnp.max(jnp.abs(out_big - ref_big))
    )

    print("KERNEL_OK")
</pallas_src>

<mosaic_0001>
module attributes {stable_mosaic.version = 11 : i64} {
  func.func @_bassl_det_kernel_lane_dense(%arg0: i32, %arg1: memref<128x32xf32, #tpu.memory_space<vmem>>, %arg2: memref<32x32xf32, #tpu.memory_space<vmem>>, %arg3: memref<1x32xf32, #tpu.memory_space<vmem>>, %arg4: memref<1x32xf32, #tpu.memory_space<vmem>>, %arg5: memref<1x1xf32, #tpu.memory_space<vmem>>, %arg6: memref<1x1x128xf32, #tpu.memory_space<vmem>>) attributes {dimension_semantics = [#tpu.dimension_semantics<parallel>], iteration_bounds = array<i64: 1>, scalar_prefetch = 0 : i64, scratch_operands = 0 : i64, tpu.core_type = #tpu.core_type<tc>, window_params = [{transform_indices = @transform_0, window_bounds = array<i64: 128, 32>}, {pipeline_mode = #tpu.pipeline_mode<synchronous>, transform_indices = @transform_1, window_bounds = array<i64: 32, 32>}, {pipeline_mode = #tpu.pipeline_mode<synchronous>, transform_indices = @transform_2, window_bounds = array<i64: 1, 32>}, {pipeline_mode = #tpu.pipeline_mode<synchronous>, transform_indices = @transform_3, window_bounds = array<i64: 1, 32>}, {pipeline_mode = #tpu.pipeline_mode<synchronous>, transform_indices = @transform_4, window_bounds = array<i64: 1, 1>}, {transform_indices = @transform_5, window_bounds = array<i64: 1, 1, 128>}]} {
    %c0 = arith.constant 0 : index
    %c0_0 = arith.constant 0 : index
    %0 = vector.load %arg1[%c0, %c0_0] : memref<128x32xf32, #tpu.memory_space<vmem>>, vector<128x32xf32>
    %c0_1 = arith.constant 0 : index
    %c0_2 = arith.constant 0 : index
    %1 = vector.load %arg2[%c0_1, %c0_2] : memref<32x32xf32, #tpu.memory_space<vmem>>, vector<32x32xf32>
    %cst = arith.constant dense<0.000000e+00> : vector<128x32xf32>
    %2 = tpu.matmul %0, %1, %cst {dimension_numbers = #tpu.dot_dimension_numbers<[1], [0], [0], [1], [0, 0, 1, 1], [], []>} : vector<128x32xf32>, vector<32x32xf32>, vector<128x32xf32> -> vector<128x32xf32>
    %c0_3 = arith.constant 0 : index
    %c0_4 = arith.constant 0 : index
    %3 = vector.load %arg3[%c0_3, %c0_4] : memref<1x32xf32, #tpu.memory_space<vmem>>, vector<1x32xf32>
    %4 = vector.broadcast %3 : vector<1x32xf32> to vector<128x32xf32>
    %5 = arith.addf %2, %4 : vector<128x32xf32>
    %cst_5 = arith.constant 0.000000e+00 : f32
    %6 = vector.broadcast %cst_5 : f32 to vector<128x32xf32>
    %7 = arith.maximumf %5, %6 : vector<128x32xf32>
    %c0_6 = arith.constant 0 : index
    %c0_7 = arith.constant 0 : index
    %8 = vector.load %arg4[%c0_6, %c0_7] : memref<1x32xf32, #tpu.memory_space<vmem>>, vector<1x32xf32>
    %cst_8 = arith.constant dense<0.000000e+00> : vector<1x128xf32>
    %9 = tpu.matmul %8, %7, %cst_8 {dimension_numbers = #tpu.dot_dimension_numbers<[1], [1], [0], [0], [0, 0, 1, 0], [], []>} : vector<1x32xf32>, vector<128x32xf32>, vector<1x128xf32> -> vector<1x128xf32>
    %c0_9 = arith.constant 0 : index
    %c0_10 = arith.constant 0 : index
    %10 = vector.load %arg5[%c0_9, %c0_10] : memref<1x1xf32, #tpu.memory_space<vmem>>, vector<1x1xf32>
    %11 = vector.broadcast %10 : vector<1x1xf32> to vector<1x128xf32>
    %12 = arith.addf %9, %11 : vector<1x128xf32>
    %13 = arith.negf %12 : vector<1x128xf32>
    %14 = math.exp %13 : vector<1x128xf32>
    %cst_11 = arith.constant 1.000000e+00 : f32
    %15 = vector.broadcast %cst_11 : f32 to vector<1x128xf32>
    %16 = arith.addf %15, %14 : vector<1x128xf32>
    %17 = arith.divf %15, %16 : vector<1x128xf32>
    %18 = vector.shape_cast %17 : vector<1x128xf32> to vector<1x1x128xf32>
    %c0_12 = arith.constant 0 : index
    %c0_13 = arith.constant 0 : index
    %c0_14 = arith.constant 0 : index
    %19 = vector.load %arg6[%c0_12, %c0_13, %c0_14] : memref<1x1x128xf32, #tpu.memory_space<vmem>>, vector<1x1x128xf32>
    tpu.vector_store %arg6[%c0_12, %c0_13, %c0_14], %18 {strides = array<i32>} : memref<1x1x128xf32, #tpu.memory_space<vmem>>, vector<1x1x128xf32>,
    return
  }
  func.func @transform_0(%arg0: i32) -> (i32, i32) {
    %c0_i32 = arith.constant 0 : i32
    %c0_i32_0 = arith.constant 0 : i32
    return %arg0, %c0_i32 : i32, i32
  }
  func.func @transform_1(%arg0: i32) -> (i32, i32) {
    %c0_i32 = arith.constant 0 : i32
    %c0_i32_0 = arith.constant 0 : i32
    %c0_i32_1 = arith.constant 0 : i32
    return %c0_i32, %c0_i32_0 : i32, i32
  }
  func.func @transform_2(%arg0: i32) -> (i32, i32) {
    %c0_i32 = arith.constant 0 : i32
    %c0_i32_0 = arith.constant 0 : i32
    %c0_i32_1 = arith.constant 0 : i32
    return %c0_i32, %c0_i32_0 : i32, i32
  }
  func.func @transform_3(%arg0: i32) -> (i32, i32) {
    %c0_i32 = arith.constant 0 : i32
    %c0_i32_0 = arith.constant 0 : i32
    %c0_i32_1 = arith.constant 0 : i32
    return %c0_i32, %c0_i32_0 : i32, i32
  }
  func.func @transform_4(%arg0: i32) -> (i32, i32) {
    %c0_i32 = arith.constant 0 : i32
    %c0_i32_0 = arith.constant 0 : i32
    %c0_i32_1 = arith.constant 0 : i32
    return %c0_i32, %c0_i32_0 : i32, i32
  }
  func.func @transform_5(%arg0: i32) -> (i32, i32, i32) {
    %c0_i32 = arith.constant 0 : i32
    %c0_i32_0 = arith.constant 0 : i32
    %c0_i32_1 = arith.constant 0 : i32
    return %arg0, %c0_i32, %c0_i32_0 : i32, i32, i32
  }
}

</mosaic_0001>

<llo_original>
// kernel: tpu_custom_call.1
$region0: #{tpu_custom_call.1}
  #allocation0 [shape = 'u32[]', space=smem, size = 0x4, offset = 0x4, fixed_abs, tag = 'smem constant byte address 0x4 - core index']
  #allocation1 [shape = 'u32[144,128]{1,0:T(1,128)}', space=vmem, size = 0x12000, scoped, tag = 'internal scratch']
  #allocation2 [shape = 'f32[1,1]{1,0:T(1,128)S(1)}', space=vmem, size = 0x200, scoped, tag = 'scoped memory for tpu_custom_call.1']
  %s0 = inlined_call_operand.vmem [shape: f32[128,32], index: 0, kind: input, shape index: {}]
  %s1 = inlined_call_operand.vmem [shape: f32[32,32], index: 1, kind: input, shape index: {}]
  %s2 = inlined_call_operand.vmem [shape: f32[1,32], index: 2, kind: input, shape index: {}]
  %s3 = inlined_call_operand.vmem [shape: f32[1,32], index: 3, kind: input, shape index: {}]
  %s4 = inlined_call_operand.<no memory space> [shape: f32[1,1], index: 4, kind: input, shape index: {}]
  %s5 = inlined_call_operand.hbm [shape: f32[1,1,128], index: 5, kind: output, shape index: {}]
  %s6 = sld [smem:[#allocation0]]
  $region30: #{tpu_custom_call.1} parent=0
    _
  %s8 = ssub.s32 1, %s6
  %s9 = scalar_select 0, %s8, %s6
  %v10 = vstv %s4
  %11 = vst [vmem:[#allocation2] sm:$0x1] %v10
  $region1: #{tpu_custom_call.1} parent=0
    #allocation3 [shape = 'u8[512]{0}', space=vmem, size = 0x400, scoped, tag = 'output window, operand 0, single buffered']
    #allocation4 [shape = 's32[1]{0}', space=sflag, size = 0x4, scoped, tag = 'scoped memory for tpu_custom_call.1']
    %12 = vsyncpa [#allocation4], 0
    // Predicated region
    $region2: #{tpu_custom_call.1} parent=1 // pred_check
      _
    $region3: #{tpu_custom_call.1} parent=1 // pred_check_branch
      %14 = sbr.rel (0) target = $region5
    $region4: #{tpu_custom_call.1} parent=1 // pred_region
      _
    $region5: #{tpu_custom_call.1} parent=1 // pred_fallthru
      _
    // Predicated region
    $region6: #{tpu_custom_call.1} parent=1 // pred_check
      _
    $region7: #{tpu_custom_call.1} parent=1 // pred_check_branch
      %16 = sbr.rel (0) target = $region9
    $region8: #{tpu_custom_call.1} parent=1 // pred_region
      _
    $region9: #{tpu_custom_call.1} parent=1 // pred_fallthru
      _
    // Predicated region
    $region10: #{tpu_custom_call.1} parent=1 // pred_check
      _
    $region11: #{tpu_custom_call.1} parent=1 // pred_check_branch
      %18 = sbr.rel (0) target = $region13
    $region12: #{tpu_custom_call.1} parent=1 // pred_region
      _
    $region13: #{tpu_custom_call.1} parent=1 // pred_fallthru
      _
    // Predicated region
    $region14: #{tpu_custom_call.1} parent=1 // pred_check
      _
    $region15: #{tpu_custom_call.1} parent=1 // pred_check_branch
      %20 = sbr.rel (0) target = $region17
    $region16: #{tpu_custom_call.1} parent=1 // pred_region
      _
    $region17: #{tpu_custom_call.1} parent=1 // pred_fallthru
      _
    // Predicated region
    $region18: #{tpu_custom_call.1} parent=1 // pred_check
      _
    $region19: #{tpu_custom_call.1} parent=1 // pred_check_branch
      %22 = sbr.rel (0) target = $region21
    $region20: #{tpu_custom_call.1} parent=1 // pred_region
      _
    $region21: #{tpu_custom_call.1} parent=1 // pred_fallthru
      _
    %v23 = vld [vmem:[%s0] sm:$0xff]
    %v24 = vld [vmem:[%s0 + $0x8] sm:$0xff]
    %v25 = vld [vmem:[%s0 + $0x10] sm:$0xff]
    %v26 = vld [vmem:[%s0 + $0x18] sm:$0xff]
    %v27 = vld [vmem:[%s0 + $0x20] sm:$0xff]
    %v28 = vld [vmem:[%s0 + $0x28] sm:$0xff]
    %v29 = vld [vmem:[%s0 + $0x30] sm:$0xff]
    %v30 = vld [vmem:[%s0 + $0x38] sm:$0xff]
    %v31 = vld [vmem:[%s0 + $0x40] sm:$0xff]
    %v32 = vld [vmem:[%s0 + $0x48] sm:$0xff]
    %v33 = vld [vmem:[%s0 + $0x50] sm:$0xff]
    %v34 = vld [vmem:[%s0 + $0x58] sm:$0xff]
    %v35 = vld [vmem:[%s0 + $0x60] sm:$0xff]
    %v36 = vld [vmem:[%s0 + $0x68] sm:$0xff]
    %v37 = vld [vmem:[%s0 + $0x70] sm:$0xff]
    %v38 = vld [vmem:[%s0 + $0x78] sm:$0xff]
    %v39 = vld [vmem:[%s1] sm:$0xff]
    %v40 = vld [vmem:[%s1 + $0x8] sm:$0xff]
    %v41 = vld [vmem:[%s1 + $0x10] sm:$0xff]
    %v42 = vld [vmem:[%s1 + $0x18] sm:$0xff]
    %v43 = vld [vmem:[%s2] sm:$0x1]
    %v45 = vlaneseq
    %v46 = vshrl.u32 %v45, 7
    %v47 = vsub.s32 0, %v46
    %v48 = vrot.slane %v43, %v47
    %vm50 = vcmask 261120
    %v52 = vsel %vm50, %v23, 0
    %v55 = vsel %vm50, %v24, 0
    %v58 = vsel %vm50, %v25, 0
    %v61 = vsel %vm50, %v26, 0
    %v64 = vsel %vm50, %v27, 0
    %v67 = vsel %vm50, %v28, 0
    %v70 = vsel %vm50, %v29, 0
    %v73 = vsel %vm50, %v30, 0
    %v76 = vsel %vm50, %v31, 0
    %v79 = vsel %vm50, %v32, 0
    %v82 = vsel %vm50, %v33, 0
    %v85 = vsel %vm50, %v34, 0
    %v88 = vsel %vm50, %v35, 0
    %v91 = vsel %vm50, %v36, 0
    %v94 = vsel %vm50, %v37, 0
    %v97 = vsel %vm50, %v38, 0
    %99 = vmatprep.subr.mxu0 0.0
    %100 = vmatpush1.msra.mxu0 %v39
    %101 = vmatprep.subr.mxu0 0.0
    %102 = vmatpush1.msra.mxu0 %v40
    %103 = vmatprep.subr.mxu0 0.0
    %104 = vmatpush1.msra.mxu0 %v41
    %105 = vmatprep.subr.mxu0 0.0
    %106 = vmatpush1.msra.mxu0 %v42
    %107 = vmatprep.subr.mxu0 0.0
    %108 = vmatpush1.msra.mxu0 0.0
    %109 = vmatprep.subr.mxu0 0.0
    %110 = vmatpush1.msra.mxu0 0.0
    %111 = vmatprep.subr.mxu0 0.0
    %112 = vmatpush1.msra.mxu0 0.0
    %113 = vmatprep.subr.mxu0 0.0
    %114 = vmatpush1.msra.mxu0 0.0
    %115 = vmatprep.subr.mxu0 0.0
    %116 = vmatpush1.msra.mxu0 0.0
    %117 = vmatprep.subr.mxu0 0.0
    %118 = vmatpush1.msra.mxu0 0.0
    %119 = vmatprep.subr.mxu0 0.0
    %120 = vmatpush1.msra.mxu0 0.0
    %121 = vmatprep.subr.mxu0 0.0
    %122 = vmatpush1.msra.mxu0 0.0
    %123 = vmatprep.subr.mxu0 0.0
    %124 = vmatpush1.msra.mxu0 0.0
    %125 = vmatprep.subr.mxu0 0.0
    %126 = vmatpush1.msra.mxu0 0.0
    %127 = vmatprep.subr.mxu0 0.0
    %128 = vmatpush1.msra.mxu0 0.0
    %129 = vmatprep.subr.mxu0 0.0
    %130 = vmatpush1.msra.mxu0 0.0
    %131 = vmatprep.subr.mxu0 0.0
    %132 = vmatpush1.msra.mxu0 0.0
    %133 = vmatprep.subr.mxu0 0.0
    %134 = vmatpush1.msra.mxu0 0.0
    %135 = vmatprep.subr.mxu0 0.0
    %136 = vmatpush1.msra.mxu0 0.0
    %137 = vmatprep.subr.mxu0 0.0
    %138 = vmatpush1.msra.mxu0 0.0
    %139 = vmatprep.subr.mxu0 0.0
    %140 = vmatpush1.msra.mxu0 0.0
    %141 = vmatprep.subr.mxu0 0.0
    %142 = vmatpush1.msra.mxu0 0.0
    %143 = vmatprep.subr.mxu0 0.0
    %144 = vmatpush1.msra.mxu0 0.0
    %145 = vmatprep.subr.mxu0 0.0
    %146 = vmatpush1.msra.mxu0 0.0
    %147 = vmatprep.subr.mxu0 0.0
    %148 = vmatpush1.msra.mxu0 0.0
    %149 = vmatprep.subr.mxu0 0.0
    %150 = vmatpush1.msra.mxu0 0.0
    %151 = vmatprep.subr.mxu0 0.0
    %152 = vmatpush1.msra.mxu0 0.0
    %153 = vmatprep.subr.mxu0 0.0
    %154 = vmatpush1.msra.mxu0 0.0
    %155 = vmatprep.subr.mxu0 0.0
    %156 = vmatpush1.msra.mxu0 0.0
    %157 = vmatprep.subr.mxu0 0.0
    %158 = vmatpush1.msra.mxu0 0.0
    %159 = vmatprep.subr.mxu0 0.0
    %160 = vmatpush1.msra.mxu0 0.0
    %161 = vmatprep.subr.mxu0 0.0
    %162 = vmatpush1.msra.mxu0 0.0
    %163 = vmatprep.mubr.f32.mxu0 0.0
    %164 = vmatmul.mubr.f32.gmra.mrb[0].mxu0 %v52
    %v165 = vpop.f32.mrb[0].mxu0
    %v166 = vadd.f32 %v48, %v165
    %v167 = vpop.f32.mrb[0].mxu0
    %168 = vmatprep.mubr.f32.mxu0 0.0
    %169 = vmatmul.mubr.f32.gmra.mrb[0].mxu0 %v55
    %v170 = vpop.f32.mrb[0].mxu0
    %v171 = vadd.f32 %v48, %v170
    %v172 = vpop.f32.mrb[0].mxu0
    %173 = vmatprep.mubr.f32.mxu0 0.0
    %174 = vmatmul.mubr.f32.gmra.mrb[0].mxu0 %v58
    %v175 = vpop.f32.mrb[0].mxu0
    %v176 = vadd.f32 %v48, %v175
    %v177 = vpop.f32.mrb[0].mxu0
    %178 = vmatprep.mubr.f32.mxu0 0.0
    %179 = vmatmul.mubr.f32.gmra.mrb[0].mxu0 %v61
    %v180 = vpop.f32.mrb[0].mxu0
    %v181 = vadd.f32 %v48, %v180
    %v182 = vpop.f32.mrb[0].mxu0
    %183 = vmatprep.mubr.f32.mxu0 0.0
    %184 = vmatmul.mubr.f32.gmra.mrb[0].mxu0 %v64
    %v185 = vpop.f32.mrb[0].mxu0
    %v186 = vadd.f32 %v48, %v185
    %v187 = vpop.f32.mrb[0].mxu0
    %188 = vmatprep.mubr.f32.mxu0 0.0
    %189 = vmatmul.mubr.f32.gmra.mrb[0].mxu0 %v67
    %v190 = vpop.f32.mrb[0].mxu0
    %v191 = vadd.f32 %v48, %v190
    %v192 = vpop.f32.mrb[0].mxu0
    %193 = vmatprep.mubr.f32.mxu0 0.0
    %194 = vmatmul.mubr.f32.gmra.mrb[0].mxu0 %v70
    %v195 = vpop.f32.mrb[0].mxu0
    %v196 = vadd.f32 %v48, %v195
    %v197 = vpop.f32.mrb[0].mxu0
    %198 = vmatprep.mubr.f32.mxu0 0.0
    %199 = vmatmul.mubr.f32.gmra.mrb[0].mxu0 %v73
    %v200 = vpop.f32.mrb[0].mxu0
    %v201 = vadd.f32 %v48, %v200
    %v202 = vpop.f32.mrb[0].mxu0
    %203 = vmatprep.mubr.f32.mxu0 0.0
    %204 = vmatmul.mubr.f32.gmra.mrb[0].mxu0 %v76
    %v205 = vpop.f32.mrb[0].mxu0
    %v206 = vadd.f32 %v48, %v205
    %v207 = vpop.f32.mrb[0].mxu0
    %208 = vmatprep.mubr.f32.mxu0 0.0
    %209 = vmatmul.mubr.f32.gmra.mrb[0].mxu0 %v79
    %v210 = vpop.f32.mrb[0].mxu0
    %v211 = vadd.f32 %v48, %v210
    %v212 = vpop.f32.mrb[0].mxu0
    %213 = vmatprep.mubr.f32.mxu0 0.0
    %214 = vmatmul.mubr.f32.gmra.mrb[0].mxu0 %v82
    %v215 = vpop.f32.mrb[0].mxu0
    %v216 = vadd.f32 %v48, %v215
    %v217 = vpop.f32.mrb[0].mxu0
    %218 = vmatprep.mubr.f32.mxu0 0.0
    %219 = vmatmul.mubr.f32.gmra.mrb[0].mxu0 %v85
    %v220 = vpop.f32.mrb[0].mxu0
    %v221 = vadd.f32 %v48, %v220
    %v222 = vpop.f32.mrb[0].mxu0
    %223 = vmatprep.mubr.f32.mxu0 0.0
    %224 = vmatmul.mubr.f32.gmra.mrb[0].mxu0 %v88
    %v225 = vpop.f32.mrb[0].mxu0
    %v226 = vadd.f32 %v48, %v225
    %v227 = vpop.f32.mrb[0].mxu0
    %228 = vmatprep.mubr.f32.mxu0 0.0
    %229 = vmatmul.mubr.f32.gmra.mrb[0].mxu0 %v91
    %v230 = vpop.f32.mrb[0].mxu0
    %v231 = vadd.f32 %v48, %v230
    %v232 = vpop.f32.mrb[0].mxu0
    %233 = vmatprep.mubr.f32.mxu0 0.0
    %234 = vmatmul.mubr.f32.gmra.mrb[0].mxu0 %v94
    %v235 = vpop.f32.mrb[0].mxu0
    %v236 = vadd.f32 %v48, %v235
    %v237 = vpop.f32.mrb[0].mxu0
    %238 = vmatprep.mubr.f32.mxu0 0.0
    %239 = vmatmul.mubr.f32.gmra.mrb[0].mxu0 %v97
    %v240 = vpop.f32.mrb[0].mxu0
    %v241 = vadd.f32 %v48, %v240
    %v242 = vpop.f32.mrb[0].mxu0
    %243 = vdwg.mxu0
    %v244 = vmax.f32 %v166, 0.0
    %v245 = vmax.f32 %v171, 0.0
    %v246 = vmax.f32 %v176, 0.0
    %v247 = vmax.f32 %v181, 0.0
    %v248 = vmax.f32 %v186, 0.0
    %v249 = vmax.f32 %v191, 0.0
    %v250 = vmax.f32 %v196, 0.0
    %v251 = vmax.f32 %v201, 0.0
    %v252 = vmax.f32 %v206, 0.0
    %v253 = vmax.f32 %v211, 0.0
    %v254 = vmax.f32 %v216, 0.0
    %v255 = vmax.f32 %v221, 0.0
    %v256 = vmax.f32 %v226, 0.0
    %v257 = vmax.f32 %v231, 0.0
    %v258 = vmax.f32 %v236, 0.0
    %v259 = vmax.f32 %v241, 0.0
    %v260 = vld [vmem:[%s3] sm:$0x1]
    %v261 = vld [vmem:[#allocation2] sm:$0x1]
    %263 = vset.pattern.permute.xlu0 0
    %264 = vperm.xlu0 %263, %v261
    %v265 = vpop.permute.xlu0 %264
    %v267 = vlaneseq
    %v268 = vshrl.u32 %v267, 7
    %v269 = vsub.s32 0, %v268
    %v270 = vrot.slane %v265, %v269
    %v272 = vsel %vm50, %v260, 0
    %v275 = vsel %vm50, %v244, 0
    %v278 = vsel %vm50, %v245, 0
    %v281 = vsel %vm50, %v246, 0
    %v284 = vsel %vm50, %v247, 0
    %v287 = vsel %vm50, %v248, 0
    %v290 = vsel %vm50, %v249, 0
    %v293 = vsel %vm50, %v250, 0
    %v296 = vsel %vm50, %v251, 0
    %v299 = vsel %vm50, %v252, 0
    %v302 = vsel %vm50, %v253, 0
    %v305 = vsel %vm50, %v254, 0
    %v308 = vsel %vm50, %v255, 0
    %v311 = vsel %vm50, %v256, 0
    %v314 = vsel %vm50, %v257, 0
    %v317 = vsel %vm50, %v258, 0
    %v320 = vsel %vm50, %v259, 0
    %322 = vmatprep.subr.mxu0 0.0
    %323 = vmatpush1.xpose.msra.mxu0 %v275
    %324 = vmatprep.subr.mxu0 0.0
    %325 = vmatpush1.xpose.msra.mxu0 %v278
    %326 = vmatprep.subr.mxu0 0.0
    %327 = vmatpush1.xpose.msra.mxu0 %v281
    %328 = vmatprep.subr.mxu0 0.0
    %329 = vmatpush1.xpose.msra.mxu0 %v284
    %330 = vmatprep.subr.mxu0 0.0
    %331 = vmatpush1.xpose.msra.mxu0 %v287
    %332 = vmatprep.subr.mxu0 0.0
    %333 = vmatpush1.xpose.msra.mxu0 %v290
    %334 = vmatprep.subr.mxu0 0.0
    %335 = vmatpush1.xpose.msra.mxu0 %v293
    %336 = vmatprep.subr.mxu0 0.0
    %337 = vmatpush1.xpose.msra.mxu0 %v296
    %338 = vmatprep.subr.mxu0 0.0
    %339 = vmatpush1.xpose.msra.mxu0 %v299
    %340 = vmatprep.subr.mxu0 0.0
    %341 = vmatpush1.xpose.msra.mxu0 %v302
    %342 = vmatprep.subr.mxu0 0.0
    %343 = vmatpush1.xpose.msra.mxu0 %v305
    %344 = vmatprep.subr.mxu0 0.0
    %345 = vmatpush1.xpose.msra.mxu0 %v308
    %346 = vmatprep.subr.mxu0 0.0
    %347 = vmatpush1.xpose.msra.mxu0 %v311
    %348 = vmatprep.subr.mxu0 0.0
    %349 = vmatpush1.xpose.msra.mxu0 %v314
    %350 = vmatprep.subr.mxu0 0.0
    %351 = vmatpush1.xpose.msra.mxu0 %v317
    %352 = vmatprep.subr.mxu0 0.0
    %353 = vmatpush1.xpose.msra.mxu0 %v320
    %354 = vmatprep.subr.mxu0 0.0
    %355 = vmatpush1.xpose.msra.mxu0 0.0
    %356 = vmatprep.subr.mxu0 0.0
    %357 = vmatpush1.xpose.msra.mxu0 0.0
    %358 = vmatprep.subr.mxu0 0.0
    %359 = vmatpush1.xpose.msra.mxu0 0.0
    %360 = vmatprep.subr.mxu0 0.0
    %361 = vmatpush1.xpose.msra.mxu0 0.0
    %362 = vmatprep.subr.mxu0 0.0
    %363 = vmatpush1.xpose.msra.mxu0 0.0
    %364 = vmatprep.subr.mxu0 0.0
    %365 = vmatpush1.xpose.msra.mxu0 0.0
    %366 = vmatprep.subr.mxu0 0.0
    %367 = vmatpush1.xpose.msra.mxu0 0.0
    %368 = vmatprep.subr.mxu0 0.0
    %369 = vmatpush1.xpose.msra.mxu0 0.0
    %370 = vmatprep.subr.mxu0 0.0
    %371 = vmatpush1.xpose.msra.mxu0 0.0
    %372 = vmatprep.subr.mxu0 0.0
    %373 = vmatpush1.xpose.msra.mxu0 0.0
    %374 = vmatprep.subr.mxu0 0.0
    %375 = vmatpush1.xpose.msra.mxu0 0.0
    %376 = vmatprep.subr.mxu0 0.0
    %377 = vmatpush1.xpose.msra.mxu0 0.0
    %378 = vmatprep.subr.mxu0 0.0
    %379 = vmatpush1.xpose.msra.mxu0 0.0
    %380 = vmatprep.subr.mxu0 0.0
    %381 = vmatpush1.xpose.msra.mxu0 0.0
    %382 = vmatprep.subr.mxu0 0.0
    %383 = vmatpush1.xpose.msra.mxu0 0.0
    %384 = vmatprep.subr.mxu0 0.0
    %385 = vmatpush1.xpose.msra.mxu0 0.0
    %386 = vmatprep.mubr.f32.mxu0 0.0
    %387 = vmatmul.mubr.f32.gmra.mrb[0].mxu0 %v272
    %v388 = vpop.f32.mrb[0].mxu0
    %v389 = vadd.f32 %v270, %v388
    %v390 = vpop.f32.mrb[0].mxu0
    %391 = vdwg.mxu0
    %v392 = vxor.u32 %v389, 2147483648
    %v393 = vmul.f32 %v392, 1.442695
    %v394 = vpow.pop %v393
    %v395 = vadd.f32 %v394, 1.0
    %v396 = vrcp.pop %v395
    %v397 = vmul.f32 1.0, %v396
    %398 = vst [vmem:[#allocation3] sm:$0x1] %v397
    // Predicated region
    $region22: #{tpu_custom_call.1} parent=1 // pred_check
      _
    $region23: #{tpu_custom_call.1} parent=1 // pred_check_branch
      %400 = sbr.rel (0) target = $region25
    $region24: #{tpu_custom_call.1} parent=1 // pred_region
      %s402 = ssub.s32 16, 16
      %403 = vsyncadd [#allocation4], %s402
      %s405 = sshll.u32 [#allocation3], 4
      %s406 = int_to_ptr.vmem [resolvable:$true] %s405
      %408 = dma.vmem_to_hbm [thread:$0]  %s406, 16, %s5, [#allocation4]
    $region25: #{tpu_custom_call.1} parent=1 // pred_fallthru
      _
    // Predicated region
    $region26: #{tpu_custom_call.1} parent=1 // pred_check
      _
    $region27: #{tpu_custom_call.1} parent=1 // pred_check_branch
      %410 = sbr.rel (0) target = $region29
    $region28: #{tpu_custom_call.1} parent=1 // pred_region
      %411 = dma.done [#allocation4], 16
    $region29: #{tpu_custom_call.1} parent=1 // pred_fallthru
      _
    %412 = vsyncpa [#allocation4], 1

</llo_original>
